<compile_context>
chip_gen: v7x
topology: tpu7x:2x2x1
jax: 0.10.0
libtpu: 0.0.40
codegen_flags: <defaults>
</compile_context>

<pallas_src>
import numpy as np
import jax
import jax.numpy as jnp
from jax.experimental import pallas as pl
from jax.experimental.pallas import tpu as pltpu

OBS_DIM = 17
ACT_DIM = 6

# Dispatch thresholds (see header comment for the VMEM / overhead arithmetic).
GRIDLESS_MAX_BATCH = 16384   # <= this: one grid-less pallas_call, no pipeline machinery
TILE_BATCH = 8192            # row tile for the batch-tiled path (multiple of 8)

SMALL_BATCH = 8              # docstring-scale example batch (grid-less path)
MEDIUM_BATCH = 1200          # exercises the tiled path incl. a partial last block
TEST_TILE = 512              # small tile used only in the self-test to force tiling


def _linear_kernel(x_ref, w_ref, b_ref, o_ref):
    # x_ref: [TM, obs_dim], w_ref: [obs_dim, act_dim], b_ref: [1, act_dim]
    acc = jnp.dot(x_ref[...], w_ref[...], preferred_element_type=jnp.float32)
    o_ref[...] = (acc + b_ref[...]).astype(o_ref.dtype)


def _linear_gridless(obs, w_t, bias2d):
    """Grid-less path: whole problem in one VMEM block, no pipeline machinery.

    Used for all batches up to GRIDLESS_MAX_BATCH (the 0.35 us/step pipeline
    overhead of a grid would dominate at these sizes)."""
    b = obs.shape[0]
    act_dim = w_t.shape[1]
    return pl.pallas_call(
        _linear_kernel,
        out_shape=jax.ShapeDtypeStruct((b, act_dim), jnp.float32),
        in_specs=[
            pl.BlockSpec(memory_space=pltpu.MemorySpace.VMEM),
            pl.BlockSpec(memory_space=pltpu.MemorySpace.VMEM),
            pl.BlockSpec(memory_space=pltpu.MemorySpace.VMEM),
        ],
        out_specs=pl.BlockSpec(memory_space=pltpu.MemorySpace.VMEM),
    )(obs, w_t, bias2d)


def _linear_tiled(obs, w_t, bias2d, tm):
    """Batch-tiled path for very large batches.

    1-D grid over row tiles; weight/bias stay VMEM-resident via index_map (0, 0).
    No jnp.pad / output slice: grid = cdiv(B, TM) and Pallas masks the partial
    last block on writeback (each output row depends only on its own input row,
    so garbage in the padded tail of the last input block is harmless).
    dimension_semantics=("parallel",) lets v7x's two TensorCores split the batch
    axis (no-op on single-TC v5e/v6e)."""
    b, obs_dim = obs.shape
    act_dim = w_t.shape[1]
    n_tiles = pl.cdiv(b, tm)

    return pl.pallas_call(
        _linear_kernel,
        out_shape=jax.ShapeDtypeStruct((b, act_dim), jnp.float32),
        grid=(n_tiles,),
        in_specs=[
            pl.BlockSpec((tm, obs_dim), lambda i: (i, 0)),        # batch tile
            pl.BlockSpec((obs_dim, act_dim), lambda i: (0, 0)),   # weight resident
            pl.BlockSpec((1, act_dim), lambda i: (0, 0)),         # bias resident
        ],
        out_specs=pl.BlockSpec((tm, act_dim), lambda i: (i, 0)),
        compiler_params=pltpu.CompilerParams(
            dimension_semantics=("parallel",)),
    )(obs, w_t, bias2d)


def linear_forward(obs, w_t, bias2d, *,
                   gridless_max=GRIDLESS_MAX_BATCH, tile_batch=TILE_BATCH):
    """obs: [B, obs_dim] f32; w_t: [obs_dim, act_dim]; bias2d: [1, act_dim].
    Returns [B, act_dim] f32 (== torch.nn.Linear(obs)).

    Note: for docstring-scale batches (B ~ 8) inside a larger program, a plain
    `obs @ w_t + bias2d` (XLA) or fusion into the surrounding rollout kernel is
    strictly faster than any standalone pallas_call; the Pallas path is kept so
    the kernel itself is exercised end-to-end."""
    b = obs.shape[0]
    if b <= gridless_max:
        return _linear_gridless(obs, w_t, bias2d)
    return _linear_tiled(obs, w_t, bias2d, tile_batch)


def init_params(key, obs_dim, act_dim):
    """Deterministic init mimicking torch.nn.Linear default
    U(-1/sqrt(in_features), 1/sqrt(in_features)).
    The transpose / bias reshape are done HERE (once), not per call."""
    kw, kb = jax.random.split(key)
    bound = 1.0 / np.sqrt(obs_dim)
    weight = jax.random.uniform(kw, (act_dim, obs_dim), jnp.float32,
                                minval=-bound, maxval=bound)   # PyTorch layout
    bias = jax.random.uniform(kb, (act_dim,), jnp.float32,
                              minval=-bound, maxval=bound)
    w_t = jnp.asarray(weight.T)                     # [obs_dim, act_dim], hoisted
    bias2d = jnp.asarray(bias.reshape(1, act_dim))  # [1, act_dim], hoisted
    return weight, bias, w_t, bias2d


if __name__ == "__main__":
    key = jax.random.PRNGKey(0)
    k_small, k_med, k_params = jax.random.split(key, 3)

    weight, bias, w_t, bias2d = init_params(k_params, OBS_DIM, ACT_DIM)

    # --- docstring-scale example: grid-less path ---
    obs_small = jax.random.normal(k_small, (SMALL_BATCH, OBS_DIM), jnp.float32)
    out_small = jax.block_until_ready(linear_forward(obs_small, w_t, bias2d))
    ref_small = obs_small @ weight.T + bias
    np.testing.assert_allclose(np.asarray(out_small), np.asarray(ref_small),
                               rtol=1e-5, atol=1e-5)

    # --- tiled path self-test (small tile forced so the test stays tiny):
    #     B=1200, TM=512 -> 3 grid steps, last block partial (no pad/slice). ---
    obs_med = jax.random.normal(k_med, (MEDIUM_BATCH, OBS_DIM), jnp.float32)
    out_med = jax.block_until_ready(
        linear_forward(obs_med, w_t, bias2d,
                       gridless_max=0, tile_batch=TEST_TILE))
    ref_med = obs_med @ weight.T + bias
    np.testing.assert_allclose(np.asarray(out_med), np.asarray(ref_med),
                               rtol=1e-5, atol=1e-5)

    print("KERNEL_OK")
</pallas_src>

<mosaic_0001>
module attributes {stable_mosaic.version = 11 : i64} {
  func.func @_linear_kernel(%arg0: memref<8x17xf32, #tpu.memory_space<vmem>>, %arg1: memref<17x6xf32, #tpu.memory_space<vmem>>, %arg2: memref<1x6xf32, #tpu.memory_space<vmem>>, %arg3: memref<8x6xf32, #tpu.memory_space<vmem>>) attributes {dimension_semantics = [], scalar_prefetch = 0 : i64, scratch_operands = 0 : i64, tpu.core_type = #tpu.core_type<tc>} {
    %c0 = arith.constant 0 : index
    %c0_0 = arith.constant 0 : index
    %0 = vector.load %arg0[%c0, %c0_0] : memref<8x17xf32, #tpu.memory_space<vmem>>, vector<8x17xf32>
    %c0_1 = arith.constant 0 : index
    %c0_2 = arith.constant 0 : index
    %1 = vector.load %arg1[%c0_1, %c0_2] : memref<17x6xf32, #tpu.memory_space<vmem>>, vector<17x6xf32>
    %cst = arith.constant dense<0.000000e+00> : vector<8x6xf32>
    %2 = tpu.matmul %0, %1, %cst {dimension_numbers = #tpu.dot_dimension_numbers<[1], [0], [0], [1], [0, 0, 1, 1], [], []>} : vector<8x17xf32>, vector<17x6xf32>, vector<8x6xf32> -> vector<8x6xf32>
    %c0_3 = arith.constant 0 : index
    %c0_4 = arith.constant 0 : index
    %3 = vector.load %arg2[%c0_3, %c0_4] : memref<1x6xf32, #tpu.memory_space<vmem>>, vector<1x6xf32>
    %4 = vector.broadcast %3 : vector<1x6xf32> to vector<8x6xf32>
    %5 = arith.addf %2, %4 : vector<8x6xf32>
    %c0_5 = arith.constant 0 : index
    %c0_6 = arith.constant 0 : index
    %6 = vector.load %arg3[%c0_5, %c0_6] : memref<8x6xf32, #tpu.memory_space<vmem>>, vector<8x6xf32>
    tpu.vector_store %arg3[%c0_5, %c0_6], %5 {strides = array<i32>} : memref<8x6xf32, #tpu.memory_space<vmem>>, vector<8x6xf32>,
    return
  }
}

</mosaic_0001>

<llo_original>
// kernel: tpu_custom_call.1
$region0: #{tpu_custom_call.1}
  #allocation0 [shape = 'u32[]', space=smem, size = 0x4, offset = 0x4, fixed_abs, tag = 'smem constant byte address 0x4 - core index']
  #allocation1 [shape = 'u32[144,128]{1,0:T(1,128)}', space=vmem, size = 0x12000, scoped, tag = 'internal scratch']
  %s0 = inlined_call_operand.vmem [shape: f32[8,17], index: 0, kind: input, shape index: {}]
  %s1 = inlined_call_operand.vmem [shape: f32[17,6], index: 1, kind: input, shape index: {}]
  %s2 = inlined_call_operand.vmem [shape: f32[1,6], index: 2, kind: input, shape index: {}]
  %s3 = inlined_call_operand.hbm [shape: f32[8,6], index: 3, kind: output, shape index: {}]
  %s4 = sld [smem:[#allocation0]]
  $region22: #{tpu_custom_call.1} parent=0
    _
  %s6 = ssub.s32 1, %s4
  %s7 = scalar_select 0, %s6, %s4
  $region1: #{tpu_custom_call.1} parent=0
    #allocation2 [shape = 'u8[4096]{0}', space=vmem, size = 0x1000, scoped, tag = 'output window, operand 0, single buffered']
    #allocation3 [shape = 's32[1]{0}', space=sflag, size = 0x4, scoped, tag = 'scoped memory for tpu_custom_call.1']
    %8 = vsyncpa [#allocation3], 0
    // Predicated region
    $region2: #{tpu_custom_call.1} parent=1 // pred_check
      _
    $region3: #{tpu_custom_call.1} parent=1 // pred_check_branch
      %10 = sbr.rel (0) target = $region5
    $region4: #{tpu_custom_call.1} parent=1 // pred_region
      _
    $region5: #{tpu_custom_call.1} parent=1 // pred_fallthru
      _
    // Predicated region
    $region6: #{tpu_custom_call.1} parent=1 // pred_check
      _
    $region7: #{tpu_custom_call.1} parent=1 // pred_check_branch
      %12 = sbr.rel (0) target = $region9
    $region8: #{tpu_custom_call.1} parent=1 // pred_region
      _
    $region9: #{tpu_custom_call.1} parent=1 // pred_fallthru
      _
    // Predicated region
    $region10: #{tpu_custom_call.1} parent=1 // pred_check
      _
    $region11: #{tpu_custom_call.1} parent=1 // pred_check_branch
      %14 = sbr.rel (0) target = $region13
    $region12: #{tpu_custom_call.1} parent=1 // pred_region
      _
    $region13: #{tpu_custom_call.1} parent=1 // pred_fallthru
      _
    %v15 = vld [vmem:[%s0] sm:$0xff]
    %v16 = vld [vmem:[%s1] sm:$0xff]
    %v17 = vld [vmem:[%s1 + $0x8] sm:$0xff]
    %v18 = vld [vmem:[%s1 + $0x10] sm:$0x1]
    %v19 = vld [vmem:[%s2] sm:$0x1]
    %v21 = vlaneseq
    %v22 = vshrl.u32 %v21, 7
    %v23 = vsub.s32 0, %v22
    %v24 = vrot.slane %v19, %v23
    %vm26 = vcmask 138240
    %v28 = vsel %vm26, %v15, 0
    %vm30 = vcmask 1040384
    %v32 = vsel %vm30, %v18, 0
    %34 = vmatprep.subr.mxu0 0.0
    %35 = vmatpush1.msra.mxu0 %v16
    %36 = vmatprep.subr.mxu0 0.0
    %37 = vmatpush1.msra.mxu0 %v17
    %38 = vmatprep.subr.mxu0 0.0
    %39 = vmatpush1.msra.mxu0 %v32
    %40 = vmatprep.subr.mxu0 0.0
    %41 = vmatpush1.msra.mxu0 0.0
    %42 = vmatprep.subr.mxu0 0.0
    %43 = vmatpush1.msra.mxu0 0.0
    %44 = vmatprep.subr.mxu0 0.0
    %45 = vmatpush1.msra.mxu0 0.0
    %46 = vmatprep.subr.mxu0 0.0
    %47 = vmatpush1.msra.mxu0 0.0
    %48 = vmatprep.subr.mxu0 0.0
    %49 = vmatpush1.msra.mxu0 0.0
    %50 = vmatprep.subr.mxu0 0.0
    %51 = vmatpush1.msra.mxu0 0.0
    %52 = vmatprep.subr.mxu0 0.0
    %53 = vmatpush1.msra.mxu0 0.0
    %54 = vmatprep.subr.mxu0 0.0
    %55 = vmatpush1.msra.mxu0 0.0
    %56 = vmatprep.subr.mxu0 0.0
    %57 = vmatpush1.msra.mxu0 0.0
    %58 = vmatprep.subr.mxu0 0.0
    %59 = vmatpush1.msra.mxu0 0.0
    %60 = vmatprep.subr.mxu0 0.0
    %61 = vmatpush1.msra.mxu0 0.0
    %62 = vmatprep.subr.mxu0 0.0
    %63 = vmatpush1.msra.mxu0 0.0
    %64 = vmatprep.subr.mxu0 0.0
    %65 = vmatpush1.msra.mxu0 0.0
    %66 = vmatprep.subr.mxu0 0.0
    %67 = vmatpush1.msra.mxu0 0.0
    %68 = vmatprep.subr.mxu0 0.0
    %69 = vmatpush1.msra.mxu0 0.0
    %70 = vmatprep.subr.mxu0 0.0
    %71 = vmatpush1.msra.mxu0 0.0
    %72 = vmatprep.subr.mxu0 0.0
    %73 = vmatpush1.msra.mxu0 0.0
    %74 = vmatprep.subr.mxu0 0.0
    %75 = vmatpush1.msra.mxu0 0.0
    %76 = vmatprep.subr.mxu0 0.0
    %77 = vmatpush1.msra.mxu0 0.0
    %78 = vmatprep.subr.mxu0 0.0
    %79 = vmatpush1.msra.mxu0 0.0
    %80 = vmatprep.subr.mxu0 0.0
    %81 = vmatpush1.msra.mxu0 0.0
    %82 = vmatprep.subr.mxu0 0.0
    %83 = vmatpush1.msra.mxu0 0.0
    %84 = vmatprep.subr.mxu0 0.0
    %85 = vmatpush1.msra.mxu0 0.0
    %86 = vmatprep.subr.mxu0 0.0
    %87 = vmatpush1.msra.mxu0 0.0
    %88 = vmatprep.subr.mxu0 0.0
    %89 = vmatpush1.msra.mxu0 0.0
    %90 = vmatprep.subr.mxu0 0.0
    %91 = vmatpush1.msra.mxu0 0.0
    %92 = vmatprep.subr.mxu0 0.0
    %93 = vmatpush1.msra.mxu0 0.0
    %94 = vmatprep.subr.mxu0 0.0
    %95 = vmatpush1.msra.mxu0 0.0
    %96 = vmatprep.subr.mxu0 0.0
    %97 = vmatpush1.msra.mxu0 0.0
    %98 = vmatprep.mubr.f32.mxu0 0.0
    %99 = vmatmul.mubr.f32.gmra.mrb[0].mxu0 %v28
    %v100 = vpop.f32.mrb[0].mxu0
    %v101 = vadd.f32 %v24, %v100
    %v102 = vpop.f32.mrb[0].mxu0
    %103 = vdwg.mxu0
    %vm104 = vcmask 48128
    %105 = vst.msk [vmem:[#allocation2] sm:$0xff] %vm104, %v101
    // Predicated region
    $region14: #{tpu_custom_call.1} parent=1 // pred_check
      _
    $region15: #{tpu_custom_call.1} parent=1 // pred_check_branch
      %107 = sbr.rel (0) target = $region17
    $region16: #{tpu_custom_call.1} parent=1 // pred_region
      %s109 = ssub.s32 128, 128
      %110 = vsyncadd [#allocation3], %s109
      %s112 = sshll.u32 [#allocation2], 4
      %s113 = int_to_ptr.vmem [resolvable:$true] %s112
      %115 = dma.vmem_to_hbm [thread:$0]  %s113, 128, %s3, [#allocation3]
    $region17: #{tpu_custom_call.1} parent=1 // pred_fallthru
      _
    // Predicated region
    $region18: #{tpu_custom_call.1} parent=1 // pred_check
      _
    $region19: #{tpu_custom_call.1} parent=1 // pred_check_branch
      %117 = sbr.rel (0) target = $region21
    $region20: #{tpu_custom_call.1} parent=1 // pred_region
      %118 = dma.done [#allocation3], 128
    $region21: #{tpu_custom_call.1} parent=1 // pred_fallthru
      _
    %119 = vsyncpa [#allocation3], 1

</llo_original>
